<compile_context>
chip_gen: v7x
topology: tpu7x:2x2x1
jax: 0.10.0
libtpu: 0.0.40
codegen_flags: <defaults>
</compile_context>

<pallas_src>
import functools

import jax
import jax.numpy as jnp
from jax.experimental import pallas as pl
from jax.experimental.pallas import tpu as pltpu


# --------------------------------------------------------------------------
# Kernel: one batch tile  y[bb,1] = sum(x[bb,D] * w[1,D], axis=1) + b[1,1]
# --------------------------------------------------------------------------
def _gemv_kernel(x_ref, w_ref, b_ref, o_ref):
    # TODO(synk): nn.Dropout(0.2/0.2/0.1) layers are identity in eval mode and
    # were folded away together with the Linear layers in fold_params().
    xw = x_ref[...] * w_ref[...]                          # VPU, f32, sublane-bcast w
    o_ref[...] = jnp.sum(xw, axis=1, keepdims=True) + b_ref[...]


# --------------------------------------------------------------------------
# One-time parameter fold (run outside the per-call hot path).
# --------------------------------------------------------------------------
def fold_params(params):
    """Collapse the 5 Linear layers (Dropout = identity in eval) into a single
    affine map. Returns (w_fold: (1, D) f32, b_fold: (1, 1) f32)."""
    w = params["w1"]
    b = params["b1"]
    for i in range(2, 6):
        w = w @ params[f"w{i}"]
        b = b @ params[f"w{i}"] + params[f"b{i}"]
    return (w.reshape(1, -1).astype(jnp.float32),
            b.reshape(1, 1).astype(jnp.float32))


# --------------------------------------------------------------------------
# Wrapper
# --------------------------------------------------------------------------
def _round_up(v, m):
    return ((v + m - 1) // m) * m


def _tpu_info():
    try:
        return pltpu.get_tpu_info()
    except Exception:
        return None


def _estimate_vmem_bytes(bb, d, x_bufs):
    x_tile = bb * d * 4
    out_tile = bb * 128 * 4          # (bb,1) block pads to a full lane in VMEM
    w_tile = (d + 128) * 4
    # x pipelined buffers + one x-tile of elementwise temporaries + out double
    # buffer + weight/bias (+shadow) + 1 MiB slack for compiler scratch.
    return x_bufs * x_tile + x_tile + 2 * out_tile + 2 * w_tile + (1 << 20)


@functools.partial(jax.jit, static_argnames=("block_b", "x_buffer_count"))
def aesthetic_mlp_forward(x, w_fold, b_fold, block_b=1024, x_buffer_count=2):
    """AestheticMLP.forward (eval mode) on folded params.

    x:       (B, D) float32 — streamed directly from HBM (no wrapper passes).
    w_fold:  (1, D) float32, b_fold: (1, 1) float32 — from fold_params().
    returns  (B, 1) float32.
    """
    B, D = x.shape
    assert w_fold.shape == (1, D) and b_fold.shape == (1, 1)

    # Generation-aware knobs (v7x: 64 MiB VMEM / 2 TCs; v5e/v6e: 128 MiB / 1 TC).
    info = _tpu_info()
    vmem_cap = getattr(info, "vmem_capacity_bytes", None) if info is not None else None
    cap = int(0.8 * vmem_cap) if vmem_cap else 48 * 1024 * 1024
    num_tc = 1
    if info is not None:
        for attr in ("num_tensorcores", "tensorcores_per_chip", "num_cores"):
            v = getattr(info, attr, None)
            if isinstance(v, int) and v > 0:
                num_tc = v
                break

    x_bufs = max(2, int(x_buffer_count))

    # --- batch tile selection ------------------------------------------------
    bb = _round_up(max(8, int(block_b)), 8)
    # Megacore: keep >= num_tc grid steps (only when tiles stay >= 512 rows);
    # no-op on single-TC chips.
    if num_tc > 1 and B >= num_tc * 512:
        bb = min(bb, max(512, _round_up(pl.cdiv(B, num_tc), 8)))
    # Shrink until the estimate fits the VMEM budget.
    while bb > 128 and _estimate_vmem_bytes(bb, D, x_bufs) > cap:
        bb = _round_up(max(128, bb // 2), 8)
    if B <= bb:
        bb = B            # single full-extent tile (block == full array dim)
    num_tiles = pl.cdiv(B, bb)

    vmem_limit = int(max(32 * 1024 * 1024,
                         min(cap, 2 * _estimate_vmem_bytes(bb, D, x_bufs))))

    x_spec_kwargs = {}
    if x_bufs > 2:        # optional deeper pipelining for HBM-streaming (v7x)
        x_spec_kwargs["pipeline_mode"] = pl.Buffered(x_bufs)
    x_spec = pl.BlockSpec((bb, D), lambda i: (i, 0), **x_spec_kwargs)

    # Grid-constant folded weight row / bias (DMA'd once, tiny).
    w_spec = pl.BlockSpec((1, D), lambda i: (0, 0))
    b_spec = pl.BlockSpec((1, 1), lambda i: (0, 0))

    return pl.pallas_call(
        _gemv_kernel,
        out_shape=jax.ShapeDtypeStruct((B, 1), jnp.float32),
        grid_spec=pltpu.PrefetchScalarGridSpec(
            num_scalar_prefetch=0,
            grid=(num_tiles,),
            in_specs=[x_spec, w_spec, b_spec],
            out_specs=pl.BlockSpec((bb, 1), lambda i: (i, 0)),
        ),
        compiler_params=pltpu.CompilerParams(
            dimension_semantics=("parallel",),
            vmem_limit_bytes=vmem_limit),
    )(x, w_fold, b_fold)


# --------------------------------------------------------------------------
# PyTorch-equivalent init + layered reference (original module semantics)
# --------------------------------------------------------------------------
def init_params(key, input_size):
    """PyTorch nn.Linear default init (U(-k, k), k=1/sqrt(fan_in)).
    Weights stored as (in_features, out_features) == torch weight.T"""
    dims = [(input_size, 1024), (1024, 128), (128, 64), (64, 16), (16, 1)]
    params = {}
    for idx, (fan_in, fan_out) in enumerate(dims, start=1):
        key, kw, kb = jax.random.split(key, 3)
        bound = 1.0 / jnp.sqrt(fan_in)
        params[f"w{idx}"] = jax.random.uniform(
            kw, (fan_in, fan_out), jnp.float32, minval=-bound, maxval=bound)
        params[f"b{idx}"] = jax.random.uniform(
            kb, (fan_out,), jnp.float32, minval=-bound, maxval=bound)
    return params


def reference_forward(x, params):
    """Layer-by-layer reference (Dropout = identity in eval mode)."""
    h = x
    for i in range(1, 6):
        h = h @ params[f"w{i}"] + params[f"b{i}"]
    return h


if __name__ == "__main__":
    key = jax.random.PRNGKey(0)
    k_x, k_p = jax.random.split(key)

    B, D = 300, 256
    x = jax.random.normal(k_x, (B, D), dtype=jnp.float32)
    params = init_params(k_p, D)

    ref = reference_forward(x, params)

    # Fold once, outside the hot path (review item).
    w_fold, b_fold = fold_params(params)

    # Single full-extent tile path.
    out = jax.block_until_ready(aesthetic_mlp_forward(x, w_fold, b_fold))
    assert out.shape == (B, 1), out.shape
    assert jnp.allclose(out, ref, atol=2e-3, rtol=2e-3), (
        float(jnp.max(jnp.abs(out - ref))))

    # Multi-tile path with a ragged (clipped) last tile: 300 rows, tiles of 128.
    out_t = jax.block_until_ready(
        aesthetic_mlp_forward(x, w_fold, b_fold, block_b=128))
    assert out_t.shape == (B, 1), out_t.shape
    assert jnp.allclose(out_t, ref, atol=2e-3, rtol=2e-3), (
        float(jnp.max(jnp.abs(out_t - ref))))

    print("KERNEL_OK")
</pallas_src>

<mosaic_0001>
module attributes {stable_mosaic.version = 11 : i64} {
  func.func @_gemv_kernel(%arg0: i32, %arg1: memref<300x256xf32, #tpu.memory_space<vmem>>, %arg2: memref<1x256xf32, #tpu.memory_space<vmem>>, %arg3: memref<1x1xf32, #tpu.memory_space<vmem>>, %arg4: memref<300x1xf32, #tpu.memory_space<vmem>>) attributes {dimension_semantics = [#tpu.dimension_semantics<parallel>], iteration_bounds = array<i64: 1>, scalar_prefetch = 0 : i64, scratch_operands = 0 : i64, tpu.core_type = #tpu.core_type<tc>, window_params = [{transform_indices = @transform_0, window_bounds = array<i64: 300, 256>}, {pipeline_mode = #tpu.pipeline_mode<synchronous>, transform_indices = @transform_1, window_bounds = array<i64: 1, 256>}, {pipeline_mode = #tpu.pipeline_mode<synchronous>, transform_indices = @transform_2, window_bounds = array<i64: 1, 1>}, {transform_indices = @transform_3, window_bounds = array<i64: 300, 1>}]} {
    %c0 = arith.constant 0 : index
    %c0_0 = arith.constant 0 : index
    %0 = vector.load %arg1[%c0, %c0_0] : memref<300x256xf32, #tpu.memory_space<vmem>>, vector<300x256xf32>
    %c0_1 = arith.constant 0 : index
    %c0_2 = arith.constant 0 : index
    %1 = vector.load %arg2[%c0_1, %c0_2] : memref<1x256xf32, #tpu.memory_space<vmem>>, vector<1x256xf32>
    %2 = vector.broadcast %1 : vector<1x256xf32> to vector<300x256xf32>
    %3 = arith.mulf %0, %2 : vector<300x256xf32>
    %cst = arith.constant dense<0.000000e+00> : vector<300xf32>
    %4 = vector.multi_reduction <add>, %3, %cst [1] : vector<300x256xf32> to vector<300xf32>
    %5 = vector.shape_cast %4 : vector<300xf32> to vector<300x1xf32>
    %c0_3 = arith.constant 0 : index
    %c0_4 = arith.constant 0 : index
    %6 = vector.load %arg3[%c0_3, %c0_4] : memref<1x1xf32, #tpu.memory_space<vmem>>, vector<1x1xf32>
    %7 = vector.broadcast %6 : vector<1x1xf32> to vector<300x1xf32>
    %8 = arith.addf %5, %7 : vector<300x1xf32>
    %c0_5 = arith.constant 0 : index
    %c0_6 = arith.constant 0 : index
    %9 = vector.load %arg4[%c0_5, %c0_6] : memref<300x1xf32, #tpu.memory_space<vmem>>, vector<300x1xf32>
    tpu.vector_store %arg4[%c0_5, %c0_6], %8 {strides = array<i32>} : memref<300x1xf32, #tpu.memory_space<vmem>>, vector<300x1xf32>,
    return
  }
  func.func @transform_0(%arg0: i32) -> (i32, i32) {
    %c0_i32 = arith.constant 0 : i32
    %c0_i32_0 = arith.constant 0 : i32
    return %arg0, %c0_i32 : i32, i32
  }
  func.func @transform_1(%arg0: i32) -> (i32, i32) {
    %c0_i32 = arith.constant 0 : i32
    %c0_i32_0 = arith.constant 0 : i32
    %c0_i32_1 = arith.constant 0 : i32
    return %c0_i32, %c0_i32_0 : i32, i32
  }
  func.func @transform_2(%arg0: i32) -> (i32, i32) {
    %c0_i32 = arith.constant 0 : i32
    %c0_i32_0 = arith.constant 0 : i32
    %c0_i32_1 = arith.constant 0 : i32
    return %c0_i32, %c0_i32_0 : i32, i32
  }
  func.func @transform_3(%arg0: i32) -> (i32, i32) {
    %c0_i32 = arith.constant 0 : i32
    %c0_i32_0 = arith.constant 0 : i32
    return %arg0, %c0_i32 : i32, i32
  }
}

</mosaic_0001>

<llo_original>
// kernel: aesthetic_mlp_forward.1
$region0: #{aesthetic_mlp_forward.1}
  #allocation0 [shape = 'u32[]', space=smem, size = 0x4, offset = 0x4, fixed_abs, tag = 'smem constant byte address 0x4 - core index']
  #allocation1 [shape = 'u32[144,128]{1,0:T(1,128)}', space=vmem, size = 0x12000, scoped, tag = 'internal scratch']
  #allocation2 [shape = 'f32[1,1]{1,0:T(1,128)S(1)}', space=vmem, size = 0x200, scoped, tag = 'scoped memory for aesthetic_mlp_forward.1']
  %s0 = inlined_call_operand.hbm [shape: f32[300,256], index: 0, kind: input, shape index: {}]
  %s1 = inlined_call_operand.vmem [shape: f32[1,256], index: 1, kind: input, shape index: {}]
  %s2 = inlined_call_operand.<no memory space> [shape: f32[1,1], index: 2, kind: input, shape index: {}]
  %s3 = inlined_call_operand.vmem [shape: f32[300,1], index: 3, kind: output, shape index: {}]
  %s4 = sld [smem:[#allocation0]]
  $region26: #{aesthetic_mlp_forward.1} parent=0
    _
  %s6 = ssub.s32 1, %s4
  %s7 = scalar_select 0, %s6, %s4
  %v8 = vstv %s2
  %9 = vst [vmem:[#allocation2] sm:$0x1] %v8
  $region1: #{aesthetic_mlp_forward.1} parent=0
    #allocation3 [shape = 'u8[311296]{0}', space=vmem, size = 0x4c000, scoped, tag = 'input window, operand 0, single buffered']
    #allocation4 [shape = 's32[1]{0}', space=sflag, size = 0x4, scoped, tag = 'scoped memory for aesthetic_mlp_forward.1']
    %10 = vsyncpa [#allocation4], 0
    // Predicated region
    $region2: #{aesthetic_mlp_forward.1} parent=1 // pred_check
      _
    $region3: #{aesthetic_mlp_forward.1} parent=1 // pred_check_branch
      %12 = sbr.rel (0) target = $region5
    $region4: #{aesthetic_mlp_forward.1} parent=1 // pred_region
      %s14 = ssub.s32 9728, 9728
      %15 = vsyncadd [#allocation4], %s14
      %s16 = sshll.u32 [#allocation3], 4
      %s17 = int_to_ptr.vmem [resolvable:$true] %s16
      %22 = dma.hbm_to_vmem [thread:$0]  %s0, 9728, %s17, [#allocation4], 256, 256, 16
    $region5: #{aesthetic_mlp_forward.1} parent=1 // pred_fallthru
      _
    // Predicated region
    $region6: #{aesthetic_mlp_forward.1} parent=1 // pred_check
      _
    $region7: #{aesthetic_mlp_forward.1} parent=1 // pred_check_branch
      %24 = sbr.rel (0) target = $region9
    $region8: #{aesthetic_mlp_forward.1} parent=1 // pred_region
      _
    $region9: #{aesthetic_mlp_forward.1} parent=1 // pred_fallthru
      _
    // Predicated region
    $region10: #{aesthetic_mlp_forward.1} parent=1 // pred_check
      _
    $region11: #{aesthetic_mlp_forward.1} parent=1 // pred_check_branch
      %26 = sbr.rel (0) target = $region13
    $region12: #{aesthetic_mlp_forward.1} parent=1 // pred_region
      _
    $region13: #{aesthetic_mlp_forward.1} parent=1 // pred_fallthru
      _
    // Predicated region
    $region14: #{aesthetic_mlp_forward.1} parent=1 // pred_check
      _
    $region15: #{aesthetic_mlp_forward.1} parent=1 // pred_check_branch
      %28 = sbr.rel (0) target = $region17
    $region16: #{aesthetic_mlp_forward.1} parent=1 // pred_region
      %29 = dma.done [#allocation4], 9728
    $region17: #{aesthetic_mlp_forward.1} parent=1 // pred_fallthru
      _
    %v30 = vld [vmem:[#allocation3] sm:$0xff]
    %v31 = vld [vmem:[#allocation3 + $0x8] sm:$0xff]
    %v32 = vld [vmem:[#allocation3 + $0x10] sm:$0xff]
    %v33 = vld [vmem:[#allocation3 + $0x18] sm:$0xff]
    %v34 = vld [vmem:[#allocation3 + $0x20] sm:$0xff]
    %v35 = vld [vmem:[#allocation3 + $0x28] sm:$0xff]
    %v36 = vld [vmem:[#allocation3 + $0x30] sm:$0xff]
    %v37 = vld [vmem:[#allocation3 + $0x38] sm:$0xff]
    %v38 = vld [vmem:[#allocation3 + $0x40] sm:$0xff]
    %v39 = vld [vmem:[#allocation3 + $0x48] sm:$0xff]
    %v40 = vld [vmem:[#allocation3 + $0x50] sm:$0xff]
    %v41 = vld [vmem:[#allocation3 + $0x58] sm:$0xff]
    %v42 = vld [vmem:[#allocation3 + $0x60] sm:$0xff]
    %v43 = vld [vmem:[#allocation3 + $0x68] sm:$0xff]
    %v44 = vld [vmem:[#allocation3 + $0x70] sm:$0xff]
    %v45 = vld [vmem:[#allocation3 + $0x78] sm:$0xff]
    %v46 = vld [vmem:[#allocation3 + $0x80] sm:$0xff]
    %v47 = vld [vmem:[#allocation3 + $0x88] sm:$0xff]
    %v48 = vld [vmem:[#allocation3 + $0x90] sm:$0xff]
    %v49 = vld [vmem:[#allocation3 + $0x98] sm:$0xff]
    %v50 = vld [vmem:[#allocation3 + $0xa0] sm:$0xff]
    %v51 = vld [vmem:[#allocation3 + $0xa8] sm:$0xff]
    %v52 = vld [vmem:[#allocation3 + $0xb0] sm:$0xff]
    %v53 = vld [vmem:[#allocation3 + $0xb8] sm:$0xff]
    %v54 = vld [vmem:[#allocation3 + $0xc0] sm:$0xff]
    %v55 = vld [vmem:[#allocation3 + $0xc8] sm:$0xff]
    %v56 = vld [vmem:[#allocation3 + $0xd0] sm:$0xff]
    %v57 = vld [vmem:[#allocation3 + $0xd8] sm:$0xff]
    %v58 = vld [vmem:[#allocation3 + $0xe0] sm:$0xff]
    %v59 = vld [vmem:[#allocation3 + $0xe8] sm:$0xff]
    %v60 = vld [vmem:[#allocation3 + $0xf0] sm:$0xff]
    %v61 = vld [vmem:[#allocation3 + $0xf8] sm:$0xff]
    %v62 = vld [vmem:[#allocation3 + $0x100] sm:$0xff]
    %v63 = vld [vmem:[#allocation3 + $0x108] sm:$0xff]
    %v64 = vld [vmem:[#allocation3 + $0x110] sm:$0xff]
    %v65 = vld [vmem:[#allocation3 + $0x118] sm:$0xff]
    %v66 = vld [vmem:[#allocation3 + $0x120] sm:$0xff]
    %v67 = vld [vmem:[#allocation3 + $0x128] sm:$0xff]
    %v68 = vld [vmem:[#allocation3 + $0x130] sm:$0xff]
    %v69 = vld [vmem:[#allocation3 + $0x138] sm:$0xff]
    %v70 = vld [vmem:[#allocation3 + $0x140] sm:$0xff]
    %v71 = vld [vmem:[#allocation3 + $0x148] sm:$0xff]
    %v72 = vld [vmem:[#allocation3 + $0x150] sm:$0xff]
    %v73 = vld [vmem:[#allocation3 + $0x158] sm:$0xff]
    %v74 = vld [vmem:[#allocation3 + $0x160] sm:$0xff]
    %v75 = vld [vmem:[#allocation3 + $0x168] sm:$0xff]
    %v76 = vld [vmem:[#allocation3 + $0x170] sm:$0xff]
    %v77 = vld [vmem:[#allocation3 + $0x178] sm:$0xff]
    %v78 = vld [vmem:[#allocation3 + $0x180] sm:$0xff]
    %v79 = vld [vmem:[#allocation3 + $0x188] sm:$0xff]
    %v80 = vld [vmem:[#allocation3 + $0x190] sm:$0xff]
    %v81 = vld [vmem:[#allocation3 + $0x198] sm:$0xff]
    %v82 = vld [vmem:[#allocation3 + $0x1a0] sm:$0xff]
    %v83 = vld [vmem:[#allocation3 + $0x1a8] sm:$0xff]
    %v84 = vld [vmem:[#allocation3 + $0x1b0] sm:$0xff]
    %v85 = vld [vmem:[#allocation3 + $0x1b8] sm:$0xff]
    %v86 = vld [vmem:[#allocation3 + $0x1c0] sm:$0xff]
    %v87 = vld [vmem:[#allocation3 + $0x1c8] sm:$0xff]
    %v88 = vld [vmem:[#allocation3 + $0x1d0] sm:$0xff]
    %v89 = vld [vmem:[#allocation3 + $0x1d8] sm:$0xff]
    %v90 = vld [vmem:[#allocation3 + $0x1e0] sm:$0xff]
    %v91 = vld [vmem:[#allocation3 + $0x1e8] sm:$0xff]
    %v92 = vld [vmem:[#allocation3 + $0x1f0] sm:$0xff]
    %v93 = vld [vmem:[#allocation3 + $0x1f8] sm:$0xff]
    %v94 = vld [vmem:[#allocation3 + $0x200] sm:$0xff]
    %v95 = vld [vmem:[#allocation3 + $0x208] sm:$0xff]
    %v96 = vld [vmem:[#allocation3 + $0x210] sm:$0xff]
    %v97 = vld [vmem:[#allocation3 + $0x218] sm:$0xff]
    %v98 = vld [vmem:[#allocation3 + $0x220] sm:$0xff]
    %v99 = vld [vmem:[#allocation3 + $0x228] sm:$0xff]
    %v100 = vld [vmem:[#allocation3 + $0x230] sm:$0xff]
    %v101 = vld [vmem:[#allocation3 + $0x238] sm:$0xff]
    %v102 = vld [vmem:[#allocation3 + $0x240] sm:$0xff]
    %v103 = vld [vmem:[#allocation3 + $0x248] sm:$0xff]
    %v104 = vld [vmem:[#allocation3 + $0x250] sm:$0xf]
    %v105 = vld [vmem:[#allocation3 + $0x258] sm:$0xf]
    %v106 = vld [vmem:[%s1] sm:$0x3]
    %v108 = vlaneseq
    %v109 = vshrl.u32 %v108, 7
    %v110 = vsub.s32 0, %v109
    %v111 = vrot.slane %v106, %v110
    %v112 = vlaneseq
    %v113 = vshrl.u32 %v112, 7
    %v114 = vsub.s32 1, %v113
    %v115 = vrot.slane %v106, %v114
    %v118 = vmul.f32 %v30, %v111
    %v119 = vmul.f32 %v31, %v115
    %v120 = vmul.f32 %v32, %v111
    %v121 = vmul.f32 %v33, %v115
    %v122 = vmul.f32 %v34, %v111
    %v123 = vmul.f32 %v35, %v115
    %v124 = vmul.f32 %v36, %v111
    %v125 = vmul.f32 %v37, %v115
    %v126 = vmul.f32 %v38, %v111
    %v127 = vmul.f32 %v39, %v115
    %v128 = vmul.f32 %v40, %v111
    %v129 = vmul.f32 %v41, %v115
    %v130 = vmul.f32 %v42, %v111
    %v131 = vmul.f32 %v43, %v115
    %v132 = vmul.f32 %v44, %v111
    %v133 = vmul.f32 %v45, %v115
    %v134 = vmul.f32 %v46, %v111
    %v135 = vmul.f32 %v47, %v115
    %v136 = vmul.f32 %v48, %v111
    %v137 = vmul.f32 %v49, %v115
    %v138 = vmul.f32 %v50, %v111
    %v139 = vmul.f32 %v51, %v115
    %v140 = vmul.f32 %v52, %v111
    %v141 = vmul.f32 %v53, %v115
    %v142 = vmul.f32 %v54, %v111
    %v143 = vmul.f32 %v55, %v115
    %v144 = vmul.f32 %v56, %v111
    %v145 = vmul.f32 %v57, %v115
    %v146 = vmul.f32 %v58, %v111
    %v147 = vmul.f32 %v59, %v115
    %v148 = vmul.f32 %v60, %v111
    %v149 = vmul.f32 %v61, %v115
    %v150 = vmul.f32 %v62, %v111
    %v151 = vmul.f32 %v63, %v115
    %v152 = vmul.f32 %v64, %v111
    %v153 = vmul.f32 %v65, %v115
    %v154 = vmul.f32 %v66, %v111
    %v155 = vmul.f32 %v67, %v115
    %v156 = vmul.f32 %v68, %v111
    %v157 = vmul.f32 %v69, %v115
    %v158 = vmul.f32 %v70, %v111
    %v159 = vmul.f32 %v71, %v115
    %v160 = vmul.f32 %v72, %v111
    %v161 = vmul.f32 %v73, %v115
    %v162 = vmul.f32 %v74, %v111
    %v163 = vmul.f32 %v75, %v115
    %v164 = vmul.f32 %v76, %v111
    %v165 = vmul.f32 %v77, %v115
    %v166 = vmul.f32 %v78, %v111
    %v167 = vmul.f32 %v79, %v115
    %v168 = vmul.f32 %v80, %v111
    %v169 = vmul.f32 %v81, %v115
    %v170 = vmul.f32 %v82, %v111
    %v171 = vmul.f32 %v83, %v115
    %v172 = vmul.f32 %v84, %v111
    %v173 = vmul.f32 %v85, %v115
    %v174 = vmul.f32 %v86, %v111
    %v175 = vmul.f32 %v87, %v115
    %v176 = vmul.f32 %v88, %v111
    %v177 = vmul.f32 %v89, %v115
    %v178 = vmul.f32 %v90, %v111
    %v179 = vmul.f32 %v91, %v115
    %v180 = vmul.f32 %v92, %v111
    %v181 = vmul.f32 %v93, %v115
    %v182 = vmul.f32 %v94, %v111
    %v183 = vmul.f32 %v95, %v115
    %v184 = vmul.f32 %v96, %v111
    %v185 = vmul.f32 %v97, %v115
    %v186 = vmul.f32 %v98, %v111
    %v187 = vmul.f32 %v99, %v115
    %v188 = vmul.f32 %v100, %v111
    %v189 = vmul.f32 %v101, %v115
    %v190 = vmul.f32 %v102, %v111
    %v191 = vmul.f32 %v103, %v115
    %v192 = vmul.f32 %v104, %v111
    %v193 = vmul.f32 %v105, %v115
    %v194 = vadd.f32 %v118, %v119
    %195 = vadd.xlane.f32.xlu0 %v194
    %v196 = vpop.xlane.xlu0 %195
    %v197 = vadd.f32 %v120, %v121
    %198 = vadd.xlane.f32.xlu0 %v197
    %v199 = vpop.xlane.xlu0 %198
    %v200 = vadd.f32 %v122, %v123
    %201 = vadd.xlane.f32.xlu0 %v200
    %v202 = vpop.xlane.xlu0 %201
    %v203 = vadd.f32 %v124, %v125
    %204 = vadd.xlane.f32.xlu0 %v203
    %v205 = vpop.xlane.xlu0 %204
    %v206 = vadd.f32 %v126, %v127
    %207 = vadd.xlane.f32.xlu0 %v206
    %v208 = vpop.xlane.xlu0 %207
    %v209 = vadd.f32 %v128, %v129
    %210 = vadd.xlane.f32.xlu0 %v209
    %v211 = vpop.xlane.xlu0 %210
    %v212 = vadd.f32 %v130, %v131
    %213 = vadd.xlane.f32.xlu0 %v212
    %v214 = vpop.xlane.xlu0 %213
    %v215 = vadd.f32 %v132, %v133
    %216 = vadd.xlane.f32.xlu0 %v215
    %v217 = vpop.xlane.xlu0 %216
    %v218 = vadd.f32 %v134, %v135
    %219 = vadd.xlane.f32.xlu0 %v218
    %v220 = vpop.xlane.xlu0 %219
    %v221 = vadd.f32 %v136, %v137
    %222 = vadd.xlane.f32.xlu0 %v221
    %v223 = vpop.xlane.xlu0 %222
    %v224 = vadd.f32 %v138, %v139
    %225 = vadd.xlane.f32.xlu0 %v224
    %v226 = vpop.xlane.xlu0 %225
    %v227 = vadd.f32 %v140, %v141
    %228 = vadd.xlane.f32.xlu0 %v227
    %v229 = vpop.xlane.xlu0 %228
    %v230 = vadd.f32 %v142, %v143
    %231 = vadd.xlane.f32.xlu0 %v230
    %v232 = vpop.xlane.xlu0 %231
    %v233 = vadd.f32 %v144, %v145
    %234 = vadd.xlane.f32.xlu0 %v233
    %v235 = vpop.xlane.xlu0 %234
    %v236 = vadd.f32 %v146, %v147
    %237 = vadd.xlane.f32.xlu0 %v236
    %v238 = vpop.xlane.xlu0 %237
    %v239 = vadd.f32 %v148, %v149
    %240 = vadd.xlane.f32.xlu0 %v239
    %v241 = vpop.xlane.xlu0 %240
    %v242 = vadd.f32 %v150, %v151
    %243 = vadd.xlane.f32.xlu0 %v242
    %v244 = vpop.xlane.xlu0 %243
    %v245 = vadd.f32 %v152, %v153
    %246 = vadd.xlane.f32.xlu0 %v245
    %v247 = vpop.xlane.xlu0 %246
    %v248 = vadd.f32 %v154, %v155
    %249 = vadd.xlane.f32.xlu0 %v248
    %v250 = vpop.xlane.xlu0 %249
    %v251 = vadd.f32 %v156, %v157
    %252 = vadd.xlane.f32.xlu0 %v251
    %v253 = vpop.xlane.xlu0 %252
    %v254 = vadd.f32 %v158, %v159
    %255 = vadd.xlane.f32.xlu0 %v254
    %v256 = vpop.xlane.xlu0 %255
    %v257 = vadd.f32 %v160, %v161
    %258 = vadd.xlane.f32.xlu0 %v257
    %v259 = vpop.xlane.xlu0 %258
    %v260 = vadd.f32 %v162, %v163
    %261 = vadd.xlane.f32.xlu0 %v260
    %v262 = vpop.xlane.xlu0 %261
    %v263 = vadd.f32 %v164, %v165
    %264 = vadd.xlane.f32.xlu0 %v263
    %v265 = vpop.xlane.xlu0 %264
    %v266 = vadd.f32 %v166, %v167
    %267 = vadd.xlane.f32.xlu0 %v266
    %v268 = vpop.xlane.xlu0 %267
    %v269 = vadd.f32 %v168, %v169
    %270 = vadd.xlane.f32.xlu0 %v269
    %v271 = vpop.xlane.xlu0 %270
    %v272 = vadd.f32 %v170, %v171
    %273 = vadd.xlane.f32.xlu0 %v272
    %v274 = vpop.xlane.xlu0 %273
    %v275 = vadd.f32 %v172, %v173
    %276 = vadd.xlane.f32.xlu0 %v275
    %v277 = vpop.xlane.xlu0 %276
    %v278 = vadd.f32 %v174, %v175
    %279 = vadd.xlane.f32.xlu0 %v278
    %v280 = vpop.xlane.xlu0 %279
    %v281 = vadd.f32 %v176, %v177
    %282 = vadd.xlane.f32.xlu0 %v281
    %v283 = vpop.xlane.xlu0 %282
    %v284 = vadd.f32 %v178, %v179
    %285 = vadd.xlane.f32.xlu0 %v284
    %v286 = vpop.xlane.xlu0 %285
    %v287 = vadd.f32 %v180, %v181
    %288 = vadd.xlane.f32.xlu0 %v287
    %v289 = vpop.xlane.xlu0 %288
    %v290 = vadd.f32 %v182, %v183
    %291 = vadd.xlane.f32.xlu0 %v290
    %v292 = vpop.xlane.xlu0 %291
    %v293 = vadd.f32 %v184, %v185
    %294 = vadd.xlane.f32.xlu0 %v293
    %v295 = vpop.xlane.xlu0 %294
    %v296 = vadd.f32 %v186, %v187
    %297 = vadd.xlane.f32.xlu0 %v296
    %v298 = vpop.xlane.xlu0 %297
    %v299 = vadd.f32 %v188, %v189
    %300 = vadd.xlane.f32.xlu0 %v299
    %v301 = vpop.xlane.xlu0 %300
    %v302 = vadd.f32 %v190, %v191
    %303 = vadd.xlane.f32.xlu0 %v302
    %v304 = vpop.xlane.xlu0 %303
    %vm305 = vcmask 1043456
    %v306 = vsel %vm305, %v192, 0.0
    %v307 = vsel %vm305, %v193, 0.0
    %v308 = vadd.f32 %v306, %v307
    %309 = vadd.xlane.f32.xlu0 %v308
    %v310 = vpop.xlane.xlu0 %309
    %v311 = vld [vmem:[#allocation2] sm:$0x1]
    %v313 = vlaneseq
    %v314 = vshrl.u32 %v313, 7
    %v315 = vsub.s32 0, %v314
    %v316 = vrot.slane %v311, %v315
    %v318 = vadd.f32 %v196, %v316
    %v319 = vadd.f32 %v199, %v316
    %v320 = vadd.f32 %v202, %v316
    %v321 = vadd.f32 %v205, %v316
    %v322 = vadd.f32 %v208, %v316
    %v323 = vadd.f32 %v211, %v316
    %v324 = vadd.f32 %v214, %v316
    %v325 = vadd.f32 %v217, %v316
    %v326 = vadd.f32 %v220, %v316
    %v327 = vadd.f32 %v223, %v316
    %v328 = vadd.f32 %v226, %v316
    %v329 = vadd.f32 %v229, %v316
    %v330 = vadd.f32 %v232, %v316
    %v331 = vadd.f32 %v235, %v316
    %v332 = vadd.f32 %v238, %v316
    %v333 = vadd.f32 %v241, %v316
    %v334 = vadd.f32 %v244, %v316
    %v335 = vadd.f32 %v247, %v316
    %v336 = vadd.f32 %v250, %v316
    %v337 = vadd.f32 %v253, %v316
    %v338 = vadd.f32 %v256, %v316
    %v339 = vadd.f32 %v259, %v316
    %v340 = vadd.f32 %v262, %v316
    %v341 = vadd.f32 %v265, %v316
    %v342 = vadd.f32 %v268, %v316
    %v343 = vadd.f32 %v271, %v316
    %v344 = vadd.f32 %v274, %v316
    %v345 = vadd.f32 %v277, %v316
    %v346 = vadd.f32 %v280, %v316
    %v347 = vadd.f32 %v283, %v316
    %v348 = vadd.f32 %v286, %v316
    %v349 = vadd.f32 %v289, %v316
    %v350 = vadd.f32 %v292, %v316
    %v351 = vadd.f32 %v295, %v316
    %v352 = vadd.f32 %v298, %v316
    %v353 = vadd.f32 %v301, %v316
    %v354 = vadd.f32 %v304, %v316
    %v355 = vadd.f32 %v310, %v316
    %vm356 = vcmask 7168
    %357 = vst.msk [vmem:[%s3] sm:$0xff] %vm356, %v318
    %358 = vst.msk [vmem:[%s3 + $0x8] sm:$0xff] %vm356, %v319
    %359 = vst.msk [vmem:[%s3 + $0x10] sm:$0xff] %vm356, %v320
    %360 = vst.msk [vmem:[%s3 + $0x18] sm:$0xff] %vm356, %v321
    %361 = vst.msk [vmem:[%s3 + $0x20] sm:$0xff] %vm356, %v322
    %362 = vst.msk [vmem:[%s3 + $0x28] sm:$0xff] %vm356, %v323
    %363 = vst.msk [vmem:[%s3 + $0x30] sm:$0xff] %vm356, %v324
    %364 = vst.msk [vmem:[%s3 + $0x38] sm:$0xff] %vm356, %v325
    %365 = vst.msk [vmem:[%s3 + $0x40] sm:$0xff] %vm356, %v326
    %366 = vst.msk [vmem:[%s3 + $0x48] sm:$0xff] %vm356, %v327
    %367 = vst.msk [vmem:[%s3 + $0x50] sm:$0xff] %vm356, %v328
    %368 = vst.msk [vmem:[%s3 + $0x58] sm:$0xff] %vm356, %v329
    %369 = vst.msk [vmem:[%s3 + $0x60] sm:$0xff] %vm356, %v330
    %370 = vst.msk [vmem:[%s3 + $0x68] sm:$0xff] %vm356, %v331
    %371 = vst.msk [vmem:[%s3 + $0x70] sm:$0xff] %vm356, %v332
    %372 = vst.msk [vmem:[%s3 + $0x78] sm:$0xff] %vm356, %v333
    %373 = vst.msk [vmem:[%s3 + $0x80] sm:$0xff] %vm356, %v334
    %374 = vst.msk [vmem:[%s3 + $0x88] sm:$0xff] %vm356, %v335
    %375 = vst.msk [vmem:[%s3 + $0x90] sm:$0xff] %vm356, %v336
    %376 = vst.msk [vmem:[%s3 + $0x98] sm:$0xff] %vm356, %v337
    %377 = vst.msk [vmem:[%s3 + $0xa0] sm:$0xff] %vm356, %v338
    %378 = vst.msk [vmem:[%s3 + $0xa8] sm:$0xff] %vm356, %v339
    %379 = vst.msk [vmem:[%s3 + $0xb0] sm:$0xff] %vm356, %v340
    %380 = vst.msk [vmem:[%s3 + $0xb8] sm:$0xff] %vm356, %v341
    %381 = vst.msk [vmem:[%s3 + $0xc0] sm:$0xff] %vm356, %v342
    %382 = vst.msk [vmem:[%s3 + $0xc8] sm:$0xff] %vm356, %v343
    %383 = vst.msk [vmem:[%s3 + $0xd0] sm:$0xff] %vm356, %v344
    %384 = vst.msk [vmem:[%s3 + $0xd8] sm:$0xff] %vm356, %v345
    %385 = vst.msk [vmem:[%s3 + $0xe0] sm:$0xff] %vm356, %v346
    %386 = vst.msk [vmem:[%s3 + $0xe8] sm:$0xff] %vm356, %v347
    %387 = vst.msk [vmem:[%s3 + $0xf0] sm:$0xff] %vm356, %v348
    %388 = vst.msk [vmem:[%s3 + $0xf8] sm:$0xff] %vm356, %v349
    %389 = vst.msk [vmem:[%s3 + $0x100] sm:$0xff] %vm356, %v350
    %390 = vst.msk [vmem:[%s3 + $0x108] sm:$0xff] %vm356, %v351
    %391 = vst.msk [vmem:[%s3 + $0x110] sm:$0xff] %vm356, %v352
    %392 = vst.msk [vmem:[%s3 + $0x118] sm:$0xff] %vm356, %v353
    %393 = vst.msk [vmem:[%s3 + $0x120] sm:$0xff] %vm356, %v354
    %vm394 = vcmask 3072
    %395 = vst.msk [vmem:[%s3 + $0x128] sm:$0xf] %vm394, %v355
    // Predicated region
    $region18: #{aesthetic_mlp_forward.1} parent=1 // pred_check
      _
    $region19: #{aesthetic_mlp_forward.1} parent=1 // pred_check_branch
      %397 = sbr.rel (0) target = $region21
    $region20: #{aesthetic_mlp_forward.1} parent=1 // pred_region
      _
    $region21: #{aesthetic_mlp_forward.1} parent=1 // pred_fallthru
      _
    // Predicated region
    $region22: #{aesthetic_mlp_forward.1} parent=1 // pred_check
      _
    $region23: #{aesthetic_mlp_forward.1} parent=1 // pred_check_branch
      %399 = sbr.rel (0) target = $region25
    $region24: #{aesthetic_mlp_forward.1} parent=1 // pred_region
      _
    $region25: #{aesthetic_mlp_forward.1} parent=1 // pred_fallthru
      _
    %400 = vsyncpa [#allocation4], 1

</llo_original>
